<compile_context>
chip_gen: v5e
topology: v5e:2x2
jax: 0.10.0
libtpu: 0.0.40
codegen_flags: <defaults>
</compile_context>

<pallas_src>
import functools

import jax
import jax.numpy as jnp
from jax.experimental import pallas as pl
from jax.experimental.pallas import tpu as pltpu


def _soft_iou_kernel(pred_ref, lbl_ref, inter_ref, card_ref,
                     inter_acc, card_acc, *, hw, tile_m, c_out, binary):
    """Per-(batch, spatial-tile) accumulation of soft-IoU statistics.

    pred_ref : (C_in, TM) logits tile (native dtype, cast in-register)
    lbl_ref  : (1,  TM)   integer label tile
    inter_ref: (C_out, 1) per-batch output  sum_m probas * onehot
    card_ref : (C_out, 1) per-batch output  sum_m probas + onehot
    inter_acc, card_acc : (C_out, TM) lane-wide VMEM accumulators
    """
    i = pl.program_id(1)

    @pl.when(i == 0)
    def _():
        inter_acc[...] = jnp.zeros_like(inter_acc)
        card_acc[...] = jnp.zeros_like(card_acc)

    x = pred_ref[...].astype(jnp.float32)            # (C_in, TM)
    lbl = lbl_ref[...].astype(jnp.int32)             # (1, TM)
    tm = x.shape[1]

    cls_ids = jax.lax.broadcasted_iota(jnp.int32, (c_out, tm), 0)

    if binary:
        # Reference binary branch:
        #   probas     = [sigmoid(x), 1 - sigmoid(x)] == sigmoid([x, -x])
        #   true_1_hot = [label == 1, label == 0]
        xb = jnp.broadcast_to(x, (c_out, tm))
        signed = jnp.where(cls_ids == 0, xb, -xb)
        probas = 1.0 / (1.0 + jnp.exp(-signed))
        lbl_eff = 1 - lbl                            # channel 0 <-> label == 1
    else:
        # Numerically-stable softmax over the class (sublane) axis.
        m = jnp.max(x, axis=0, keepdims=True)
        e = jnp.exp(x - m)
        probas = e / jnp.sum(e, axis=0, keepdims=True)
        lbl_eff = lbl

    onehot = cls_ids == lbl_eff                      # bool (C_out, TM)

    if hw % tile_m != 0:
        # Only needed when the spatial extent is not a multiple of tile_m:
        # mask out columns read past the true H*W extent (garbage / NaN-safe
        # because jnp.where selects an exact zero).
        col = jax.lax.broadcasted_iota(jnp.int32, (c_out, tm), 1) + i * tile_m
        valid = col < hw
        probas = jnp.where(valid, probas, 0.0)
        onehot = jnp.logical_and(onehot, valid)

    # Pure elementwise (VPU) accumulation; no per-tile cross-lane reduce.
    inter_acc[...] += jnp.where(onehot, probas, 0.0)
    card_acc[...] += probas + onehot.astype(jnp.float32)

    @pl.when(i == pl.num_programs(1) - 1)
    def _():
        # Single XLU lane-reduce + narrow store per batch element.
        inter_ref[...] = jnp.sum(inter_acc[...], axis=1, keepdims=True)
        card_ref[...] = jnp.sum(card_acc[...], axis=1, keepdims=True)


def soft_iou_loss(pred, lbl, delta=1e-12, tile_m=2048):
    """JAX/Pallas equivalent of SoftIoULoss.forward(pred, lbl)."""
    n, c_in, h, w = pred.shape
    hw = h * w
    binary = c_in == 1
    c_out = 2 if binary else c_in

    # Free reshapes of the contiguous NCHW layout — no HBM copies.
    pred2 = pred.reshape(n, c_in, hw)
    lbl2 = lbl.reshape(n, 1, hw)

    # Lane tile: multiple of 128, clamped to the (rounded-up) spatial extent.
    tile_m = max(128, (tile_m // 128) * 128)
    tile_m = min(tile_m, ((hw + 127) // 128) * 128)
    n_tiles = pl.cdiv(hw, tile_m)

    kernel = functools.partial(
        _soft_iou_kernel, hw=hw, tile_m=tile_m, c_out=c_out, binary=binary)

    inter, card = pl.pallas_call(
        kernel,
        out_shape=(
            jax.ShapeDtypeStruct((n, c_out, 1), jnp.float32),
            jax.ShapeDtypeStruct((n, c_out, 1), jnp.float32),
        ),
        grid_spec=pltpu.PrefetchScalarGridSpec(
            num_scalar_prefetch=0,
            grid=(n, n_tiles),
            in_specs=[
                pl.BlockSpec((pl.Squeezed(), c_in, tile_m),
                             lambda b, i: (b, 0, i)),
                pl.BlockSpec((pl.Squeezed(), 1, tile_m),
                             lambda b, i: (b, 0, i)),
            ],
            out_specs=[
                pl.BlockSpec((pl.Squeezed(), c_out, 1),
                             lambda b, i: (b, 0, 0)),
                pl.BlockSpec((pl.Squeezed(), c_out, 1),
                             lambda b, i: (b, 0, 0)),
            ],
            scratch_shapes=[
                pltpu.VMEM((c_out, tile_m), jnp.float32),
                pltpu.VMEM((c_out, tile_m), jnp.float32),
            ],
        ),
        compiler_params=pltpu.CompilerParams(
            dimension_semantics=("parallel", "arbitrary")),
    )(pred2, lbl2)

    # Tiny length-C glue: combine per-batch partials, then the dice mean.
    inter_c = jnp.sum(inter[:, :, 0], axis=0)        # (C_out,)
    card_c = jnp.sum(card[:, :, 0], axis=0)          # (C_out,)
    dice_loss = jnp.mean(2.0 * inter_c / (card_c + delta))
    return 1.0 - dice_loss


def _reference(pred, lbl, delta=1e-12):
    """Pure-JAX transcription of the PyTorch forward (for verification)."""
    c = pred.shape[1]
    lbl_sq = lbl[:, 0]
    if c == 1:
        pos = jax.nn.sigmoid(pred)
        probas = jnp.concatenate([pos, 1.0 - pos], axis=1)
        oh = jnp.transpose(jax.nn.one_hot(lbl_sq, 2, dtype=jnp.float32), (0, 3, 1, 2))
        oh = jnp.concatenate([oh[:, 1:2], oh[:, 0:1]], axis=1)
    else:
        probas = jax.nn.softmax(pred, axis=1)
        oh = jnp.transpose(jax.nn.one_hot(lbl_sq, c, dtype=jnp.float32), (0, 3, 1, 2))
    inter = jnp.sum(probas * oh, axis=(0, 2, 3))
    card = jnp.sum(probas + oh, axis=(0, 2, 3))
    return 1.0 - jnp.mean(2.0 * inter / (card + delta))


if __name__ == "__main__":
    key = jax.random.PRNGKey(0)
    k1, k2, k3, k4, k5, k6 = jax.random.split(key, 6)

    # Multi-class case (the common path): N=2, C=4, H=W=16.
    N, C, H, W = 2, 4, 16, 16
    pred = jax.random.normal(k1, (N, C, H, W), dtype=jnp.float32)
    lbl = jax.random.randint(k2, (N, 1, H, W), 0, C, dtype=jnp.int32)
    loss = jax.block_until_ready(soft_iou_loss(pred, lbl))
    ref = jax.block_until_ready(_reference(pred, lbl))
    assert jnp.allclose(loss, ref, rtol=1e-5, atol=1e-6), (loss, ref)

    # Binary (C == 1, sigmoid) branch.
    pred_b = jax.random.normal(k3, (N, 1, H, W), dtype=jnp.float32)
    lbl_b = jax.random.randint(k4, (N, 1, H, W), 0, 2, dtype=jnp.int32)
    loss_b = jax.block_until_ready(soft_iou_loss(pred_b, lbl_b))
    ref_b = jax.block_until_ready(_reference(pred_b, lbl_b))
    assert jnp.allclose(loss_b, ref_b, rtol=1e-5, atol=1e-6), (loss_b, ref_b)

    # Ragged spatial extent (H*W not a multiple of tile_m): exercises the
    # no-pad partial-tile mask path across multiple tiles.
    pred_r = jax.random.normal(k5, (2, 3, 16, 20), dtype=jnp.float32)
    lbl_r = jax.random.randint(k6, (2, 1, 16, 20), 0, 3, dtype=jnp.int32)
    loss_r = jax.block_until_ready(soft_iou_loss(pred_r, lbl_r, tile_m=128))
    ref_r = jax.block_until_ready(_reference(pred_r, lbl_r))
    assert jnp.allclose(loss_r, ref_r, rtol=1e-5, atol=1e-6), (loss_r, ref_r)

    print("KERNEL_OK")
</pallas_src>

<mosaic_0001>
module attributes {stable_mosaic.version = 11 : i64} {
  func.func @_soft_iou_kernel(%arg0: i32, %arg1: i32, %arg2: memref<1x4x256xf32, #tpu.memory_space<vmem>>, %arg3: memref<1x1x256xi32, #tpu.memory_space<vmem>>, %arg4: memref<1x4x1xf32, #tpu.memory_space<vmem>>, %arg5: memref<1x4x1xf32, #tpu.memory_space<vmem>>, %arg6: memref<4x256xf32, #tpu.memory_space<vmem>>, %arg7: memref<4x256xf32, #tpu.memory_space<vmem>>) attributes {dimension_semantics = [#tpu.dimension_semantics<parallel>, #tpu.dimension_semantics<arbitrary>], iteration_bounds = array<i64: 2, 1>, scalar_prefetch = 0 : i64, scratch_operands = 2 : i64, tpu.core_type = #tpu.core_type<tc>, window_params = [{transform_indices = @transform_0, window_bounds = array<i64: 1, 4, 256>}, {transform_indices = @transform_1, window_bounds = array<i64: 1, 1, 256>}, {transform_indices = @transform_2, window_bounds = array<i64: 1, 4, 1>}, {transform_indices = @transform_3, window_bounds = array<i64: 1, 4, 1>}]} {
    %c0_i32 = arith.constant 0 : i32
    %0 = arith.cmpi eq, %arg1, %c0_i32 : i32
    %1 = arith.extui %0 : i1 to i32
    %c0_i32_0 = arith.constant 0 : i32
    %2 = arith.cmpi ne, %1, %c0_i32_0 : i32
    scf.if %2 {
      %cst_18 = arith.constant 0.000000e+00 : f32
      %33 = vector.broadcast %cst_18 : f32 to vector<4x256xf32>
      %c0_19 = arith.constant 0 : index
      %c0_20 = arith.constant 0 : index
      %34 = vector.load %arg6[%c0_19, %c0_20] : memref<4x256xf32, #tpu.memory_space<vmem>>, vector<4x256xf32>
      tpu.vector_store %arg6[%c0_19, %c0_20], %33 {strides = array<i32>} : memref<4x256xf32, #tpu.memory_space<vmem>>, vector<4x256xf32>,
      %cst_21 = arith.constant 0.000000e+00 : f32
      %35 = vector.broadcast %cst_21 : f32 to vector<4x256xf32>
      %c0_22 = arith.constant 0 : index
      %c0_23 = arith.constant 0 : index
      %36 = vector.load %arg7[%c0_22, %c0_23] : memref<4x256xf32, #tpu.memory_space<vmem>>, vector<4x256xf32>
      tpu.vector_store %arg7[%c0_22, %c0_23], %35 {strides = array<i32>} : memref<4x256xf32, #tpu.memory_space<vmem>>, vector<4x256xf32>,
    } else {
    }
    %c0 = arith.constant 0 : index
    %c0_1 = arith.constant 0 : index
    %c0_2 = arith.constant 0 : index
    %3 = vector.load %arg2[%c0, %c0_1, %c0_2] : memref<1x4x256xf32, #tpu.memory_space<vmem>>, vector<1x4x256xf32>
    %4 = vector.shape_cast %3 : vector<1x4x256xf32> to vector<4x256xf32>
    %c0_3 = arith.constant 0 : index
    %c0_4 = arith.constant 0 : index
    %c0_5 = arith.constant 0 : index
    %5 = vector.load %arg3[%c0_3, %c0_4, %c0_5] : memref<1x1x256xi32, #tpu.memory_space<vmem>>, vector<1x1x256xi32>
    %6 = vector.shape_cast %5 : vector<1x1x256xi32> to vector<1x256xi32>
    %7 = tpu.iota {dimensions = array<i32: 0>} : vector<4x256xi32>
    %cst = arith.constant dense<0xFF800000> : vector<256xf32>
    %8 = vector.multi_reduction <maximumf>, %4, %cst [0] : vector<4x256xf32> to vector<256xf32>
    %9 = vector.shape_cast %8 : vector<256xf32> to vector<1x256xf32>
    %10 = vector.broadcast %9 : vector<1x256xf32> to vector<4x256xf32>
    %11 = arith.subf %4, %10 : vector<4x256xf32>
    %12 = math.exp %11 : vector<4x256xf32>
    %cst_6 = arith.constant dense<0.000000e+00> : vector<256xf32>
    %13 = vector.multi_reduction <add>, %12, %cst_6 [0] : vector<4x256xf32> to vector<256xf32>
    %14 = vector.shape_cast %13 : vector<256xf32> to vector<1x256xf32>
    %15 = vector.broadcast %14 : vector<1x256xf32> to vector<4x256xf32>
    %16 = arith.divf %12, %15 : vector<4x256xf32>
    %17 = vector.broadcast %6 : vector<1x256xi32> to vector<4x256xi32>
    %18 = arith.cmpi eq, %7, %17 : vector<4x256xi32>
    %c0_7 = arith.constant 0 : index
    %c0_8 = arith.constant 0 : index
    %19 = vector.load %arg6[%c0_7, %c0_8] : memref<4x256xf32, #tpu.memory_space<vmem>>, vector<4x256xf32>
    %cst_9 = arith.constant 0.000000e+00 : f32
    %20 = vector.broadcast %cst_9 : f32 to vector<4x256xf32>
    %21 = arith.select %18, %16, %20 : vector<4x256xi1>, vector<4x256xf32>
    %22 = arith.addf %19, %21 : vector<4x256xf32>
    %c0_10 = arith.constant 0 : index
    %c0_11 = arith.constant 0 : index
    %23 = vector.load %arg6[%c0_10, %c0_11] : memref<4x256xf32, #tpu.memory_space<vmem>>, vector<4x256xf32>
    tpu.vector_store %arg6[%c0_10, %c0_11], %22 {strides = array<i32>} : memref<4x256xf32, #tpu.memory_space<vmem>>, vector<4x256xf32>,
    %c0_12 = arith.constant 0 : index
    %c0_13 = arith.constant 0 : index
    %24 = vector.load %arg7[%c0_12, %c0_13] : memref<4x256xf32, #tpu.memory_space<vmem>>, vector<4x256xf32>
    %25 = arith.extui %18 : vector<4x256xi1> to vector<4x256xi32>
    %26 = arith.sitofp %25 : vector<4x256xi32> to vector<4x256xf32>
    %27 = arith.addf %16, %26 : vector<4x256xf32>
    %28 = arith.addf %24, %27 : vector<4x256xf32>
    %c0_14 = arith.constant 0 : index
    %c0_15 = arith.constant 0 : index
    %29 = vector.load %arg7[%c0_14, %c0_15] : memref<4x256xf32, #tpu.memory_space<vmem>>, vector<4x256xf32>
    tpu.vector_store %arg7[%c0_14, %c0_15], %28 {strides = array<i32>} : memref<4x256xf32, #tpu.memory_space<vmem>>, vector<4x256xf32>,
    %c0_i32_16 = arith.constant 0 : i32
    %30 = arith.cmpi eq, %arg1, %c0_i32_16 : i32
    %31 = arith.extui %30 : i1 to i32
    %c0_i32_17 = arith.constant 0 : i32
    %32 = arith.cmpi ne, %31, %c0_i32_17 : i32
    scf.if %32 {
      %c0_18 = arith.constant 0 : index
      %c0_19 = arith.constant 0 : index
      %33 = vector.load %arg6[%c0_18, %c0_19] : memref<4x256xf32, #tpu.memory_space<vmem>>, vector<4x256xf32>
      %cst_20 = arith.constant dense<0.000000e+00> : vector<4xf32>
      %34 = vector.multi_reduction <add>, %33, %cst_20 [1] : vector<4x256xf32> to vector<4xf32>
      %35 = vector.shape_cast %34 : vector<4xf32> to vector<4x1xf32>
      %c0_21 = arith.constant 0 : index
      %c0_22 = arith.constant 0 : index
      %c0_23 = arith.constant 0 : index
      %36 = vector.load %arg4[%c0_21, %c0_22, %c0_23] : memref<1x4x1xf32, #tpu.memory_space<vmem>>, vector<1x4x1xf32>
      %37 = vector.shape_cast %36 : vector<1x4x1xf32> to vector<4x1xf32>
      %38 = vector.shape_cast %35 : vector<4x1xf32> to vector<1x4x1xf32>
      tpu.vector_store %arg4[%c0_21, %c0_22, %c0_23], %38 {strides = array<i32>} : memref<1x4x1xf32, #tpu.memory_space<vmem>>, vector<1x4x1xf32>,
      %c0_24 = arith.constant 0 : index
      %c0_25 = arith.constant 0 : index
      %39 = vector.load %arg7[%c0_24, %c0_25] : memref<4x256xf32, #tpu.memory_space<vmem>>, vector<4x256xf32>
      %cst_26 = arith.constant dense<0.000000e+00> : vector<4xf32>
      %40 = vector.multi_reduction <add>, %39, %cst_26 [1] : vector<4x256xf32> to vector<4xf32>
      %41 = vector.shape_cast %40 : vector<4xf32> to vector<4x1xf32>
      %c0_27 = arith.constant 0 : index
      %c0_28 = arith.constant 0 : index
      %c0_29 = arith.constant 0 : index
      %42 = vector.load %arg5[%c0_27, %c0_28, %c0_29] : memref<1x4x1xf32, #tpu.memory_space<vmem>>, vector<1x4x1xf32>
      %43 = vector.shape_cast %42 : vector<1x4x1xf32> to vector<4x1xf32>
      %44 = vector.shape_cast %41 : vector<4x1xf32> to vector<1x4x1xf32>
      tpu.vector_store %arg5[%c0_27, %c0_28, %c0_29], %44 {strides = array<i32>} : memref<1x4x1xf32, #tpu.memory_space<vmem>>, vector<1x4x1xf32>,
    } else {
    }
    return
  }
  func.func @transform_0(%arg0: i32, %arg1: i32) -> (i32, i32, i32) {
    %c0_i32 = arith.constant 0 : i32
    %c0_i32_0 = arith.constant 0 : i32
    return %arg0, %c0_i32, %arg1 : i32, i32, i32
  }
  func.func @transform_1(%arg0: i32, %arg1: i32) -> (i32, i32, i32) {
    %c0_i32 = arith.constant 0 : i32
    %c0_i32_0 = arith.constant 0 : i32
    return %arg0, %c0_i32, %arg1 : i32, i32, i32
  }
  func.func @transform_2(%arg0: i32, %arg1: i32) -> (i32, i32, i32) {
    %c0_i32 = arith.constant 0 : i32
    %c0_i32_0 = arith.constant 0 : i32
    %c0_i32_1 = arith.constant 0 : i32
    return %arg0, %c0_i32, %c0_i32_0 : i32, i32, i32
  }
  func.func @transform_3(%arg0: i32, %arg1: i32) -> (i32, i32, i32) {
    %c0_i32 = arith.constant 0 : i32
    %c0_i32_0 = arith.constant 0 : i32
    %c0_i32_1 = arith.constant 0 : i32
    return %arg0, %c0_i32, %c0_i32_0 : i32, i32, i32
  }
}

</mosaic_0001>

<llo_original>
// kernel: tpu_custom_call.1
$region0: #{tpu_custom_call.1}
  #allocation0 [shape = 'u32[]', space=smem, size = 0x4, offset = 0x4, fixed_abs, tag = 'smem constant byte address 0x4 - core index']
  #allocation1 [shape = 'u32[72,128]{1,0:T(1,128)}', space=vmem, size = 0x9000, scoped, tag = 'internal scratch']
  #allocation2 [shape = 'f32[4,256]{1,0:T(4,128)}', space=vmem, size = 0x1000, scoped, tag = 'scratch operand']
  #allocation3 [shape = 'f32[4,256]{1,0:T(4,128)}', space=vmem, size = 0x1000, scoped, tag = 'scratch operand']
  %s0 = inlined_call_operand.hbm [shape: f32[2,4,256], index: 0, kind: input, shape index: {}]
  %s1 = inlined_call_operand.hbm [shape: s32[2,1,256], index: 1, kind: input, shape index: {}]
  %s2 = inlined_call_operand.vmem [shape: f32[2,4,1], index: 2, kind: output, shape index: {0}]
  %s3 = inlined_call_operand.vmem [shape: f32[2,4,1], index: 3, kind: output, shape index: {1}]
  %4 = xla_tuple %s2, %s3
  %s5 = sld [smem:[#allocation0]]
  $region65: #{tpu_custom_call.1} parent=0
    _
  %s7 = ssub.s32 1, %s5
  %s8 = scalar_select 0, %s7, %s5
  $region1: #{tpu_custom_call.1} parent=0
    #allocation4 [shape = 'u8[8192]{0}', space=vmem, size = 0x2000, scoped, tag = 'input window, operand 0']
    #allocation5 [shape = 's32[2]{0}', space=sflag, size = 0x8, scoped, tag = 'scoped memory for tpu_custom_call.1']
    #allocation6 [shape = 'u8[2048]{0}', space=vmem, size = 0x800, scoped, tag = 'input window, operand 1']
    #allocation7 [shape = 's32[2]{0}', space=sflag, size = 0x8, scoped, tag = 'scoped memory for tpu_custom_call.1']
    %9 = vsyncpa [#allocation5], 0
    %s10 = scalar_lea.sflag [#allocation5], 1
    %11 = vsyncpa %s10, 0
    %12 = vsyncpa [#allocation7], 0
    %s13 = scalar_lea.sflag [#allocation7], 1
    %14 = vsyncpa %s13, 0
    loop: start=0, step=1, limit=4
    $region2: #{tpu_custom_call.1} parent=1 // loop_pre_header
      _
    $region3: #{tpu_custom_call.1} parent=1 // loop_header
      %s16 = sphi 0, %s20
      %p17 = scmp.ge.s32.totalorder %s16, 4
      %s23 = sphi 0, %s35
      %s24 = sphi 0, %s31
      %s25 = sphi 0, %s23
      %s26 = sphi 0, %s24
      %s27 = sphi 0, %s25
      %s28 = sphi 0, %s26
      %s40 = sphi 0, %s42
      %s43 = sphi 0, %s40
      %s44 = sphi 0, %s43
      %s60 = sphi 0, %s44
      %s68 = sphi 0, %s70
      %s71 = sphi 0, %s68
      %s72 = sphi 0, %s71
      %s88 = sphi 0, %s72
      %s94 = sphi 0, %s96
      %s97 = sphi 0, %s94
      %s98 = sphi 0, %s97
      %s114 = sphi 0, %s98
      %s120 = sphi 0, %s122
      %s123 = sphi 0, %s120
      %s124 = sphi 0, %s123
      %s140 = sphi 0, %s124
    $region4: #{tpu_custom_call.1} parent=1 // loop_header_branch
      %19 = sbr.rel (%p17) target = $region8
    $region5: #{tpu_custom_call.1} parent=1 // loop_body
      %s21 = ssub.s32 %s16, 1
      %s22 = ssub.s32 %s16, 2
      %s29 = sadd.s32 1, %s24
      %p30 = scmp.ge.s32.totalorder %s29, 1
      %s31 = scalar_select %p30, 0, %s29
      %s32 = sadd.s32 1, %s23
      %s33 = scalar_select %p30, %s32, %s23
      %p34 = scmp.ge.s32.totalorder %s33, 2
      %s35 = scalar_select %p34, 0, %s33
      %s36 = ssub.s32 %s23, %s35
      %s37 = ssub.s32 %s24, %s31
      %s38 = sor.u32 %s36, %s37
      %p39 = scmp.eq.s32.totalorder %s38, 0
      %s41 = sadd.s32 %s40, 1
      %s42 = scalar_select %p39, %s40, %s41
      %p45 = pneg %p39
      %p46 = scmp.eq.s32.totalorder %s16, 1
      %p47 = por %p45, %p46
      %p48 = scmp.ne.s32.totalorder %s40, %s43
      %p49 = scmp.eq.s32.totalorder %s16, 0
      %p50 = por %p48, %p49
      %p51 = scmp.ne.s32.totalorder %s40, %s43
      %p52 = scmp.eq.s32.totalorder %s21, 1
      %p53 = por %p51, %p52
      %p54 = scmp.ne.s32.totalorder %s43, %s44
      %p55 = scmp.eq.s32.totalorder %s21, 0
      %p56 = por %p54, %p55
      %p57 = scmp.ne.s32.totalorder %s43, %s44
      %p58 = scmp.eq.s32.totalorder %s22, 1
      %p59 = por %p57, %p58
      %p61 = scmp.ne.s32.totalorder %s44, %s60
      %p62 = scmp.eq.s32.totalorder %s22, 0
      %p63 = por %p61, %p62
      %s64 = ssub.s32 %s23, %s35
      %s65 = ssub.s32 %s24, %s31
      %s66 = sor.u32 %s64, %s65
      %p67 = scmp.eq.s32.totalorder %s66, 0
      %s69 = sadd.s32 %s68, 1
      %s70 = scalar_select %p67, %s68, %s69
      %p73 = pneg %p67
      %p74 = scmp.eq.s32.totalorder %s16, 1
      %p75 = por %p73, %p74
      %p76 = scmp.ne.s32.totalorder %s68, %s71
      %p77 = scmp.eq.s32.totalorder %s16, 0
      %p78 = por %p76, %p77
      %p79 = scmp.ne.s32.totalorder %s68, %s71
      %p80 = scmp.eq.s32.totalorder %s21, 1
      %p81 = por %p79, %p80
      %p82 = scmp.ne.s32.totalorder %s71, %s72
      %p83 = scmp.eq.s32.totalorder %s21, 0
      %p84 = por %p82, %p83
      %p85 = scmp.ne.s32.totalorder %s71, %s72
      %p86 = scmp.eq.s32.totalorder %s22, 1
      %p87 = por %p85, %p86
      %p89 = scmp.ne.s32.totalorder %s72, %s88
      %p90 = scmp.eq.s32.totalorder %s22, 0
      %p91 = por %p89, %p90
      %s92 = ssub.s32 %s23, %s35
      %p93 = scmp.eq.s32.totalorder %s92, 0
      %s95 = sadd.s32 %s94, 1
      %s96 = scalar_select %p93, %s94, %s95
      %p99 = pneg %p93
      %p100 = scmp.eq.s32.totalorder %s16, 1
      %p101 = por %p99, %p100
      %p102 = scmp.ne.s32.totalorder %s94, %s97
      %p103 = scmp.eq.s32.totalorder %s16, 0
      %p104 = por %p102, %p103
      %p105 = scmp.ne.s32.totalorder %s94, %s97
      %p106 = scmp.eq.s32.totalorder %s21, 1
      %p107 = por %p105, %p106
      %p108 = scmp.ne.s32.totalorder %s97, %s98
      %p109 = scmp.eq.s32.totalorder %s21, 0
      %p110 = por %p108, %p109
      %p111 = scmp.ne.s32.totalorder %s97, %s98
      %p112 = scmp.eq.s32.totalorder %s22, 1
      %p113 = por %p111, %p112
      %p115 = scmp.ne.s32.totalorder %s98, %s114
      %p116 = scmp.eq.s32.totalorder %s22, 0
      %p117 = por %p115, %p116
      %s118 = ssub.s32 %s23, %s35
      %p119 = scmp.eq.s32.totalorder %s118, 0
      %s121 = sadd.s32 %s120, 1
      %s122 = scalar_select %p119, %s120, %s121
      %p125 = pneg %p119
      %p126 = scmp.eq.s32.totalorder %s16, 1
      %p127 = por %p125, %p126
      %p128 = scmp.ne.s32.totalorder %s120, %s123
      %p129 = scmp.eq.s32.totalorder %s16, 0
      %p130 = por %p128, %p129
      %p131 = scmp.ne.s32.totalorder %s120, %s123
      %p132 = scmp.eq.s32.totalorder %s21, 1
      %p133 = por %p131, %p132
      %p134 = scmp.ne.s32.totalorder %s123, %s124
      %p135 = scmp.eq.s32.totalorder %s21, 0
      %p136 = por %p134, %p135
      %p137 = scmp.ne.s32.totalorder %s123, %s124
      %p138 = scmp.eq.s32.totalorder %s22, 1
      %p139 = por %p137, %p138
      %p141 = scmp.ne.s32.totalorder %s124, %s140
      %p142 = scmp.eq.s32.totalorder %s22, 0
      %p143 = por %p141, %p142
      %p144 = scmp.le.s32.totalorder 1, %s16
      %p145 = scmp.lt.s32.totalorder %s16, 3
      %p146 = pnand %p144, %p145
      %p147 = pneg %p146
      // Predicated region
      $region9: #{tpu_custom_call.1} parent=5 // pred_check
        _
      $region10: #{tpu_custom_call.1} parent=5 // pred_check_branch
        %149 = sbr.rel (%p146) target = $region12
      $region11: #{tpu_custom_call.1} parent=5 // pred_region
        %s150 = ssub.s32 %s16, 1
      $region12: #{tpu_custom_call.1} parent=5 // pred_fallthru
        _
      %p151 = scmp.lt.s32.totalorder %s16, 2
      // Predicated region
      $region13: #{tpu_custom_call.1} parent=5 // pred_check
        %p152 = pneg %p151
      $region14: #{tpu_custom_call.1} parent=5 // pred_check_branch
        %154 = sbr.rel (%p152) target = $region16
      $region15: #{tpu_custom_call.1} parent=5 // pred_region
        // Predicated region
        $region17: #{tpu_custom_call.1} parent=15 // pred_check
          %p155 = pneg %p50
        $region18: #{tpu_custom_call.1} parent=15 // pred_check_branch
          %157 = sbr.rel (%p155) target = $region20
        $region19: #{tpu_custom_call.1} parent=15 // pred_region
          %s158 = sand.u32 %s40, 1
          %s159 = scalar_lea.sflag [#allocation5], %s158
          %s160 = sand.u32 %s40, 1
          %s161 = smul.addr %s160, 8
          %s162 = scalar_lea.vmem [#allocation4], %s161
          %s163 = smul.u32 2, %s24
          %165 = vsyncadd %s159, 0
          %s166 = smul.addr %s23, 2
          %s167 = sadd.s32 %s163, %s166
          %s168 = smul.addr %s167, 4
          %s169 = scalar_lea.hbm %s0, %s168
          %s171 = sshll.u32 %s169, 4
          %s172 = int_to_ptr.hbm [resolvable:$true] %s171
          %s173 = sshll.u32 %s162, 4
          %s174 = int_to_ptr.vmem [resolvable:$true] %s173
          %176 = dma.hbm_to_vmem [thread:$0]  %s172, 128, %s174, %s159
        $region20: #{tpu_custom_call.1} parent=15 // pred_fallthru
          _
        // Predicated region
        $region21: #{tpu_custom_call.1} parent=15 // pred_check
          %p177 = pneg %p78
        $region22: #{tpu_custom_call.1} parent=15 // pred_check_branch
          %179 = sbr.rel (%p177) target = $region24
        $region23: #{tpu_custom_call.1} parent=15 // pred_region
          %s180 = sand.u32 %s68, 1
          %s181 = scalar_lea.sflag [#allocation7], %s180
          %s182 = sand.u32 %s68, 1
          %s183 = smul.addr %s182, 2
          %s184 = scalar_lea.vmem [#allocation6], %s183
          %s185 = smul.u32 2, %s24
          %187 = vsyncadd %s181, 0
          %s188 = smul.addr %s23, 2
          %s189 = sadd.s32 %s185, %s188
          %s190 = scalar_lea.hbm %s1, %s189
          %s192 = sshll.u32 %s190, 4
          %s193 = int_to_ptr.hbm [resolvable:$true] %s192
          %s194 = sshll.u32 %s184, 4
          %s195 = int_to_ptr.vmem [resolvable:$true] %s194
          %197 = dma.hbm_to_vmem [thread:$0]  %s193, 32, %s195, %s181
        $region24: #{tpu_custom_call.1} parent=15 // pred_fallthru
          _
      $region16: #{tpu_custom_call.1} parent=5 // pred_fallthru
        _
      %p198 = scmp.le.s32.totalorder 1, %s16
      %p199 = scmp.lt.s32.totalorder %s16, 3
      %p200 = pnand %p198, %p199
      %p201 = pneg %p200
      // Predicated region
      $region25: #{tpu_custom_call.1} parent=5 // pred_check
        _
      $region26: #{tpu_custom_call.1} parent=5 // pred_check_branch
        %203 = sbr.rel (%p200) target = $region28
      $region27: #{tpu_custom_call.1} parent=5 // pred_region
        %s204 = ssub.s32 %s16, 1
        %s205 = sand.u32 %s43, 1
        %s206 = scalar_lea.sflag [#allocation5], %s205
        %s207 = sand.u32 %s43, 1
        %s208 = smul.addr %s207, 8
        %s209 = scalar_lea.vmem [#allocation4], %s208
        // Predicated region
        $region29: #{tpu_custom_call.1} parent=27 // pred_check
          %p210 = pneg %p56
        $region30: #{tpu_custom_call.1} parent=27 // pred_check_branch
          %212 = sbr.rel (%p210) target = $region32
        $region31: #{tpu_custom_call.1} parent=27 // pred_region
          %214 = dma.done %s206, 128
        $region32: #{tpu_custom_call.1} parent=27 // pred_fallthru
          _
        %s215 = sand.u32 %s71, 1
        %s216 = scalar_lea.sflag [#allocation7], %s215
        %s217 = sand.u32 %s71, 1
        %s218 = smul.addr %s217, 2
        %s219 = scalar_lea.vmem [#allocation6], %s218
        // Predicated region
        $region33: #{tpu_custom_call.1} parent=27 // pred_check
          %p220 = pneg %p84
        $region34: #{tpu_custom_call.1} parent=27 // pred_check_branch
          %222 = sbr.rel (%p220) target = $region36
        $region35: #{tpu_custom_call.1} parent=27 // pred_region
          %224 = dma.done %s216, 32
        $region36: #{tpu_custom_call.1} parent=27 // pred_fallthru
          _
        %s225 = sand.u32 %s43, 1
        %s226 = scalar_lea.sflag [#allocation5], %s225
        %s227 = sand.u32 %s43, 1
        %s228 = smul.addr %s227, 8
        %s229 = scalar_lea.vmem [#allocation4], %s228
        %p230 = pneg %p56
        %p231 = pneg %p53
        %s232 = sand.u32 %s71, 1
        %s233 = scalar_lea.sflag [#allocation7], %s232
        %s234 = sand.u32 %s71, 1
        %s235 = smul.addr %s234, 2
        %s236 = scalar_lea.vmem [#allocation6], %s235
        %p237 = pneg %p84
        %p238 = pneg %p81
        %p239 = pneg %p110
        %p240 = pneg %p107
        %p241 = scmp.lt.s32.totalorder %s25, 1
        %s242 = scalar_select %p241, %s25, 1
        %s243 = smul.addr %s242, 4
        %s244 = scalar_lea.vmem %s2, %s243
        %p245 = pneg %p136
        %p246 = pneg %p133
        %p247 = scmp.lt.s32.totalorder %s25, 1
        %s248 = scalar_select %p247, %s25, 1
        %s249 = smul.addr %s248, 4
        %s250 = scalar_lea.vmem %s3, %s249
        %s251 = smul.u32 2, %s26
        %s252 = smul.u32 2, %s26
        %p253 = scmp.lt.s32.totalorder %s25, 1
        %s254 = scalar_select %p253, %s25, 1
        %s255 = smul.addr %s254, 4
        %s256 = scalar_lea.vmem %s2, %s255
        %p257 = scmp.lt.s32.totalorder %s25, 1
        %s258 = scalar_select %p257, %s25, 1
        %s259 = smul.addr %s258, 4
        %s260 = scalar_lea.vmem %s3, %s259
        %p261 = scmp.eq.s32.totalorder %s26, 0
        // Predicated region
        $region37: #{tpu_custom_call.1} parent=27 // pred_check
          %p262 = pneg %p261
        $region38: #{tpu_custom_call.1} parent=27 // pred_check_branch
          %264 = sbr.rel (%p262) target = $region40
        $region39: #{tpu_custom_call.1} parent=27 // pred_region
          %265 = vst [vmem:[#allocation2] sm:$0xff] 0.0
          %266 = vst [vmem:[#allocation3] sm:$0xff] 0.0
        $region40: #{tpu_custom_call.1} parent=27 // pred_fallthru
          _
        %v267 = vld [vmem:[%s209] sm:$0xff]
        %v268 = vld [vmem:[%s219] sm:$0x3]
        %v269 = vlaneseq
        %v270 = vshrl.u32 %v269, 7
        %272 = vst [vmem:[#allocation1] ss:$2 sm:$0xff] %v267
        %v273 = vld.sshfl [vmem:[#allocation1] sm:$0xff pattern:$0x75316420]
        %v274 = vld.sshfl [vmem:[#allocation1 + $0x8] sm:$0xff pattern:$0x75316420]
        %vm277 = vcmask 1043456
        %v278 = vsel %vm277, %v273, -inf
        %v279 = vrot.slane %v278, 4
        %v280 = vmax.f32 %v278, %v279
        %v281 = vrot.slane %v280, 2
        %v282 = vmax.f32 %v280, %v281
        %v283 = vrot.slane %v282, 1
        %v284 = vmax.f32 %v282, %v283
        %v285 = vsel %vm277, %v274, -inf
        %v286 = vrot.slane %v285, 4
        %v287 = vmax.f32 %v285, %v286
        %v288 = vrot.slane %v287, 2
        %v289 = vmax.f32 %v287, %v288
        %v290 = vrot.slane %v289, 1
        %v291 = vmax.f32 %v289, %v290
        %v294 = vrot.slane %v291, 4
        %v295 = vsel %vm277, %v284, %v294
        %v297 = vsub.f32 %v267, %v295
        %v298 = vmul.f32 %v297, 1.442695
        %v299 = vpow.pop %v298
        %301 = vst [vmem:[#allocation1] ss:$2 sm:$0xff] %v299
        %v302 = vld.sshfl [vmem:[#allocation1] sm:$0xff pattern:$0x75316420]
        %v303 = vld.sshfl [vmem:[#allocation1 + $0x8] sm:$0xff pattern:$0x75316420]
        %v306 = vsel %vm277, %v302, 0.0
        %v307 = vrot.slane %v306, 4
        %v308 = vadd.f32 %v306, %v307
        %v309 = vrot.slane %v308, 2
        %v310 = vadd.f32 %v308, %v309
        %v311 = vrot.slane %v310, 1
        %v312 = vadd.f32 %v310, %v311
        %v313 = vsel %vm277, %v303, 0.0
        %v314 = vrot.slane %v313, 4
        %v315 = vadd.f32 %v313, %v314
        %v316 = vrot.slane %v315, 2
        %v317 = vadd.f32 %v315, %v316
        %v318 = vrot.slane %v317, 1
        %v319 = vadd.f32 %v317, %v318
        %v322 = vrot.slane %v319, 4
        %v323 = vsel %vm277, %v312, %v322
        %v325 = vrcp.pop %v323
        %v326 = vmul.f32 %v323, %v325
        %v327 = vsub.f32 1.0, %v326
        %v328 = vmul.f32 %v325, %v327
        %v329 = vadd.f32 %v325, %v328
        %vm330 = vweird.f32 %v323
        %vm331 = vweird.f32 %v325
        %vm332 = vmor %vm330, %vm331
        %v333 = vsel %vm332, %v325, %v329
        %v334 = vand.u32 2147483647, %v323
        %vm335 = vcmp.eq.f32.partialorder %v334, 8.507059e+37
        %v336 = vand.u32 %v323, 2147483648
        %v337 = vor.u32 1.1754944e-38, %v336
        %v338 = vsel %vm335, %v337, %v333
        %v339 = vmul.f32 %v299, %v338
        %v340 = vperm.slane %v268, 0
        %v341 = vperm.slane %v268, 1
        %vm342 = vcmp.eq.s32.totalorder %v270, %v340
        %vm343 = vcmp.eq.s32.totalorder %v270, %v341
        %v344 = vld [vmem:[#allocation2] sm:$0xff]
        %346 = vst [vmem:[#allocation1] ss:$2 sm:$0xff] %v339
        %v347 = vld.sshfl [vmem:[#allocation1] sm:$0xff pattern:$0x75316420]
        %v348 = vld.sshfl [vmem:[#allocation1 + $0x8] sm:$0xff pattern:$0x75316420]
        %v351 = vsel %vm342, %v347, 0.0
        %v352 = vsel %vm343, %v348, 0.0
        %v355 = vrot.slane %v352, 4
        %v356 = vsel %vm277, %v351, %v355
        %v358 = vadd.f32 %v344, %v356
        %359 = vst [vmem:[#allocation2] sm:$0xff] %v358
        %v360 = vld [vmem:[#allocation3] sm:$0xff]
        %v361 = vsel %vm342, 1, 0
        %v362 = vsel %vm343, 1, 0
        %v363 = vcvt.s32.f32 %v361
        %v364 = vcvt.s32.f32 %v362
        %v367 = vrot.slane %v364, 4
        %v368 = vsel %vm277, %v363, %v367
        %v370 = vadd.f32 %v339, %v368
        %v371 = vadd.f32 %v360, %v370
        %372 = vst [vmem:[#allocation3] sm:$0xff] %v371
        // Predicated region
        $region41: #{tpu_custom_call.1} parent=27 // pred_check
          %p373 = pneg %p261
        $region42: #{tpu_custom_call.1} parent=27 // pred_check_branch
          %375 = sbr.rel (%p373) target = $region44
        $region43: #{tpu_custom_call.1} parent=27 // pred_region
          %v376 = vld [vmem:[#allocation2] sm:$0xff]
          %378 = vst [vmem:[#allocation1] ss:$2 sm:$0xff] %v376
          %v379 = vld.sshfl [vmem:[#allocation1] sm:$0xff pattern:$0x75316420]
          %v380 = vld.sshfl [vmem:[#allocation1 + $0x8] sm:$0xff pattern:$0x75316420]
          %v383 = vsel %vm277, %v379, 0.0
          %v384 = vsel %vm277, %v380, 0.0
          %v385 = vadd.f32 %v383, %v384
          %386 = vadd.xlane.f32.xlu0 %v385
          %v387 = vpop.xlane.xlu0 %386
          %vm388 = vcmask 3072
          %389 = vst.msk [vmem:[%s256] sm:$0xf] %vm388, %v387
          %v390 = vld [vmem:[#allocation3] sm:$0xff]
          %392 = vst [vmem:[#allocation1] ss:$2 sm:$0xff] %v390
          %v393 = vld.sshfl [vmem:[#allocation1] sm:$0xff pattern:$0x75316420]
          %v394 = vld.sshfl [vmem:[#allocation1 + $0x8] sm:$0xff pattern:$0x75316420]
          %v397 = vsel %vm277, %v393, 0.0
          %v398 = vsel %vm277, %v394, 0.0
          %v399 = vadd.f32 %v397, %v398
          %400 = vadd.xlane.f32.xlu0 %v399
          %v401 = vpop.xlane.xlu0 %400
          %402 = vst.msk [vmem:[%s260] sm:$0xf] %vm388, %v401
        $region44: #{tpu_custom_call.1} parent=27 // pred_fallthru
          _
        %p403 = scmp.lt.s32.totalorder %s25, 1
        %s404 = scalar_select %p403, %s25, 1
        %s405 = smul.addr %s404, 4
        %s406 = scalar_lea.vmem %s2, %s405
        %p407 = scmp.lt.s32.totalorder %s25, 1
        %s408 = scalar_select %p407, %s25, 1
        %s409 = smul.addr %s408, 4
        %s410 = scalar_lea.vmem %s3, %s409
        // Predicated region
        $region45: #{tpu_custom_call.1} parent=27 // pred_check
          %p411 = pneg %p107
        $region46: #{tpu_custom_call.1} parent=27 // pred_check_branch
          %413 = sbr.rel (%p411) target = $region48
        $region47: #{tpu_custom_call.1} parent=27 // pred_region
          _
        $region48: #{tpu_custom_call.1} parent=27 // pred_fallthru
          _
        // Predicated region
        $region49: #{tpu_custom_call.1} parent=27 // pred_check
          %p414 = pneg %p133
        $region50: #{tpu_custom_call.1} parent=27 // pred_check_branch
          %416 = sbr.rel (%p414) target = $region52
        $region51: #{tpu_custom_call.1} parent=27 // pred_region
          _
        $region52: #{tpu_custom_call.1} parent=27 // pred_fallthru
          _
      $region28: #{tpu_custom_call.1} parent=5 // pred_fallthru
        _
      %p417 = scmp.le.s32.totalorder 2, %s16
      // Predicated region
      $region53: #{tpu_custom_call.1} parent=5 // pred_check
        %p418 = pneg %p417
      $region54: #{tpu_custom_call.1} parent=5 // pred_check_branch
        %420 = sbr.rel (%p418) target = $region56
      $region55: #{tpu_custom_call.1} parent=5 // pred_region
        %s421 = ssub.s32 %s16, 2
        // Predicated region
        $region57: #{tpu_custom_call.1} parent=55 // pred_check
          %p422 = pneg %p113
        $region58: #{tpu_custom_call.1} parent=55 // pred_check_branch
          %424 = sbr.rel (%p422) target = $region60
        $region59: #{tpu_custom_call.1} parent=55 // pred_region
          %p425 = scmp.lt.s32.totalorder %s27, 1
          %s426 = scalar_select %p425, %s27, 1
          %s427 = smul.addr %s426, 4
          %s428 = scalar_lea.vmem %s2, %s427
        $region60: #{tpu_custom_call.1} parent=55 // pred_fallthru
          _
        // Predicated region
        $region61: #{tpu_custom_call.1} parent=55 // pred_check
          %p429 = pneg %p139
        $region62: #{tpu_custom_call.1} parent=55 // pred_check_branch
          %431 = sbr.rel (%p429) target = $region64
        $region63: #{tpu_custom_call.1} parent=55 // pred_region
          %p432 = scmp.lt.s32.totalorder %s27, 1
          %s433 = scalar_select %p432, %s27, 1
          %s434 = smul.addr %s433, 4
          %s435 = scalar_lea.vmem %s3, %s434
        $region64: #{tpu_custom_call.1} parent=55 // pred_fallthru
          _
      $region56: #{tpu_custom_call.1} parent=5 // pred_fallthru
        _
    $region6: #{tpu_custom_call.1} parent=1 // loop_footer
      %s20 = sadd.s32 1, %s16
    $region7: #{tpu_custom_call.1} parent=1 // loop_footer_branch
      %15 = sbr.rel target = $region3
    $region8: #{tpu_custom_call.1} parent=1 // loop_exit
      _
    %436 = vsyncpa [#allocation5], 1
    %s437 = scalar_lea.sflag [#allocation5], 1
    %438 = vsyncpa %s437, 1
    %439 = vsyncpa [#allocation7], 1
    %s440 = scalar_lea.sflag [#allocation7], 1
    %441 = vsyncpa %s440, 1

</llo_original>
